<compile_context>
chip_gen: v6e
topology: v6e:2x2x1
jax: 0.10.0
libtpu: 0.0.40
codegen_flags: <defaults>
</compile_context>

<pallas_src>
import functools

import jax
import jax.numpy as jnp
from jax import lax
from jax.experimental import pallas as pl
from jax.experimental.pallas import tpu as pltpu

LANES = 128
CHUNK_ROWS = 8                 # one f32 vreg per chunk
TARGET_BLOCK_BYTES = 1 << 20   # ~1 MiB per input block (x2 inputs x2 buffers = 4 MiB VMEM)


def _round_up(a: int, b: int) -> int:
    return ((a + b - 1) // b) * b


def _make_kernel(alpha: float, block_rows: int):
    """Builds the kernel body; alpha and block_rows are compile-time constants."""
    alpha = float(alpha)
    is_int = alpha.is_integer()
    a_int = int(alpha)
    nchunks = block_rows // CHUNK_ROWS
    unroll = 8 if nchunks % 8 == 0 else 4 if nchunks % 4 == 0 else 2 if nchunks % 2 == 0 else 1

    def kernel(x_ref, y_ref, o_ref):
        def body(t, acc):
            r = pl.multiple_of(t * CHUNK_ROWS, CHUNK_ROWS)
            xd = x_ref[pl.ds(r, CHUNK_ROWS), :].astype(jnp.float32)
            yd = y_ref[pl.ds(r, CHUNK_ROWS), :].astype(jnp.float32)
            d = jnp.abs(xd - yd)
            if alpha >= 1.0:
                if is_int and 1 <= a_int <= 8:
                    # Integer power: repeated multiply (VALU) instead of log+exp (EUP).
                    term = d
                    for _ in range(a_int - 1):
                        term = term * d
                else:
                    term = jnp.power(d, jnp.float32(alpha))
            else:
                term = jnp.maximum(d * jnp.float32(1.0 / alpha), jnp.float32(1.0))
            return acc + term

        acc0 = jnp.zeros((CHUNK_ROWS, LANES), jnp.float32)
        o_ref[...] = lax.fori_loop(0, nchunks, body, acc0, unroll=unroll)

    return kernel


@functools.partial(jax.jit, static_argnums=(2,))
def tradeoff_loss(x, y, alpha: float):
    """Pallas implementation of TradeoffLoss(alpha).forward(x, y) -> scalar f32."""
    total = x.size
    xf = x.reshape(-1)
    yf = y.reshape(-1)

    rows = pl.cdiv(total, LANES)

    # Dtype-aware block sizing: ~1 MiB per input block, multiple of CHUNK_ROWS.
    itemsize = max(jnp.dtype(x.dtype).itemsize, jnp.dtype(y.dtype).itemsize)
    max_block_rows = max(CHUNK_ROWS,
                         (TARGET_BLOCK_BYTES // (LANES * itemsize)) // CHUNK_ROWS * CHUNK_ROWS)
    block_rows = min(max_block_rows, _round_up(rows, CHUNK_ROWS))

    padded_rows = _round_up(rows, block_rows)
    pad = padded_rows * LANES - total
    if pad:
        # TODO(synk): mask only the final partial tile in-kernel instead of a whole-array pad copy.
        xf = jnp.pad(xf, (0, pad))
        yf = jnp.pad(yf, (0, pad))
    x2 = xf.reshape(padded_rows, LANES)
    y2 = yf.reshape(padded_rows, LANES)
    n_tiles = padded_rows // block_rows

    partials = pl.pallas_call(
        _make_kernel(alpha, block_rows),
        out_shape=jax.ShapeDtypeStruct((n_tiles * CHUNK_ROWS, LANES), jnp.float32),
        grid=(n_tiles,),
        in_specs=[
            pl.BlockSpec((block_rows, LANES), lambda i: (i, 0)),
            pl.BlockSpec((block_rows, LANES), lambda i: (i, 0)),
        ],
        out_specs=pl.BlockSpec((CHUNK_ROWS, LANES), lambda i: (i, 0)),
        compiler_params=pltpu.CompilerParams(dimension_semantics=("parallel",)),
    )(x2, y2)

    s = jnp.sum(partials)
    if float(alpha) < 1.0 and pad:
        # Each zero-padded element contributed max(0, 1) = 1 to the sum.
        s = s - jnp.float32(pad)
    return s / jnp.float32(total)


def tradeoff_loss_ref(x, y, alpha: float):
    d = jnp.abs(x.astype(jnp.float32) - y.astype(jnp.float32))
    if alpha >= 1:
        return jnp.mean(jnp.power(d, alpha))
    return jnp.mean(jnp.maximum(d / alpha, 1.0))


if __name__ == "__main__":
    key = jax.random.PRNGKey(0)
    kx, ky = jax.random.split(key)

    # Small NCHW-style tensors, consistent with a regression-loss use case.
    x = jax.random.normal(kx, (2, 4, 16, 16), dtype=jnp.float32)
    y = jax.random.normal(ky, (2, 4, 16, 16), dtype=jnp.float32)
    for alpha in (2.0, 1.0, 1.5, 0.5):
        out = jax.block_until_ready(tradeoff_loss(x, y, alpha))
        ref = tradeoff_loss_ref(x, y, alpha)
        assert jnp.allclose(out, ref, rtol=1e-5, atol=1e-5), (alpha, out, ref)

    # Ragged size (exercises the padding / pad-correction path).
    xr = jax.random.normal(kx, (3, 5, 7), dtype=jnp.float32)
    yr = jax.random.normal(ky, (3, 5, 7), dtype=jnp.float32)
    for alpha in (2.0, 0.5):
        out = jax.block_until_ready(tradeoff_loss(xr, yr, alpha))
        ref = tradeoff_loss_ref(xr, yr, alpha)
        assert jnp.allclose(out, ref, rtol=1e-5, atol=1e-5), (alpha, out, ref)

    # bf16 path (native-dtype streaming, f32 accumulation in-kernel).
    xb = jax.random.normal(kx, (2, 4, 16, 16), dtype=jnp.bfloat16)
    yb = jax.random.normal(ky, (2, 4, 16, 16), dtype=jnp.bfloat16)
    for alpha in (2.0, 0.5):
        out = jax.block_until_ready(tradeoff_loss(xb, yb, alpha))
        ref = tradeoff_loss_ref(xb, yb, alpha)
        assert jnp.allclose(out, ref, rtol=1e-3, atol=1e-3), (alpha, out, ref)

    print("KERNEL_OK")
</pallas_src>

<mosaic_0001>
module attributes {stable_mosaic.version = 11 : i64} {
  func.func @kernel(%arg0: i32, %arg1: memref<16x128xf32, #tpu.memory_space<vmem>>, %arg2: memref<16x128xf32, #tpu.memory_space<vmem>>, %arg3: memref<8x128xf32, #tpu.memory_space<vmem>>) attributes {dimension_semantics = [#tpu.dimension_semantics<parallel>], iteration_bounds = array<i64: 1>, scalar_prefetch = 0 : i64, scratch_operands = 0 : i64, tpu.core_type = #tpu.core_type<tc>, window_params = [{transform_indices = @transform_0, window_bounds = array<i64: 16, 128>}, {transform_indices = @transform_1, window_bounds = array<i64: 16, 128>}, {transform_indices = @transform_2, window_bounds = array<i64: 8, 128>}]} {
    %cst = arith.constant 0.000000e+00 : f32
    %0 = vector.broadcast %cst : f32 to vector<8x128xf32>
    %c0_i32 = arith.constant 0 : i32
    %c8_i32 = arith.constant 8 : i32
    %1 = arith.muli %c0_i32, %c8_i32 : i32
    %2 = tpu.assume_multiple %1, 8 : i32
    %3 = arith.index_cast %2 : i32 to index
    %c0 = arith.constant 0 : index
    %4 = vector.load %arg1[%3, %c0] : memref<16x128xf32, #tpu.memory_space<vmem>>, vector<8x128xf32>
    %5 = arith.index_cast %2 : i32 to index
    %c0_0 = arith.constant 0 : index
    %6 = vector.load %arg2[%5, %c0_0] : memref<16x128xf32, #tpu.memory_space<vmem>>, vector<8x128xf32>
    %7 = arith.subf %4, %6 : vector<8x128xf32>
    %8 = math.absf %7 : vector<8x128xf32>
    %9 = arith.mulf %8, %8 : vector<8x128xf32>
    %10 = arith.addf %0, %9 : vector<8x128xf32>
    %c1_i32 = arith.constant 1 : i32
    %c8_i32_1 = arith.constant 8 : i32
    %11 = arith.muli %c1_i32, %c8_i32_1 : i32
    %12 = tpu.assume_multiple %11, 8 : i32
    %13 = arith.index_cast %12 : i32 to index
    %c0_2 = arith.constant 0 : index
    %14 = vector.load %arg1[%13, %c0_2] : memref<16x128xf32, #tpu.memory_space<vmem>>, vector<8x128xf32>
    %15 = arith.index_cast %12 : i32 to index
    %c0_3 = arith.constant 0 : index
    %16 = vector.load %arg2[%15, %c0_3] : memref<16x128xf32, #tpu.memory_space<vmem>>, vector<8x128xf32>
    %17 = arith.subf %14, %16 : vector<8x128xf32>
    %18 = math.absf %17 : vector<8x128xf32>
    %19 = arith.mulf %18, %18 : vector<8x128xf32>
    %20 = arith.addf %10, %19 : vector<8x128xf32>
    %c2_i32 = arith.constant 2 : i32
    %c0_4 = arith.constant 0 : index
    %c0_5 = arith.constant 0 : index
    %21 = vector.load %arg3[%c0_4, %c0_5] : memref<8x128xf32, #tpu.memory_space<vmem>>, vector<8x128xf32>
    tpu.vector_store %arg3[%c0_4, %c0_5], %20 {strides = array<i32>} : memref<8x128xf32, #tpu.memory_space<vmem>>, vector<8x128xf32>,
    return
  }
  func.func @transform_0(%arg0: i32) -> (i32, i32) {
    %c0_i32 = arith.constant 0 : i32
    %c0_i32_0 = arith.constant 0 : i32
    return %arg0, %c0_i32 : i32, i32
  }
  func.func @transform_1(%arg0: i32) -> (i32, i32) {
    %c0_i32 = arith.constant 0 : i32
    %c0_i32_0 = arith.constant 0 : i32
    return %arg0, %c0_i32 : i32, i32
  }
  func.func @transform_2(%arg0: i32) -> (i32, i32) {
    %c0_i32 = arith.constant 0 : i32
    %c0_i32_0 = arith.constant 0 : i32
    return %arg0, %c0_i32 : i32, i32
  }
}

</mosaic_0001>

<llo_original>
// kernel: tradeoff_loss.1
$region0: #{tradeoff_loss.1}
  #allocation0 [shape = 'u32[]', space=smem, size = 0x4, offset = 0x4, fixed_abs, tag = 'smem constant byte address 0x4 - core index']
  #allocation1 [shape = 'u32[144,128]{1,0:T(1,128)}', space=vmem, size = 0x12000, scoped, tag = 'internal scratch']
  %s0 = inlined_call_operand.vmem [shape: f32[16,128], index: 0, kind: input, shape index: {}]
  %s1 = inlined_call_operand.vmem [shape: f32[16,128], index: 1, kind: input, shape index: {}]
  %s2 = inlined_call_operand.vmem [shape: f32[8,128], index: 2, kind: output, shape index: {}]
  %s3 = sld [smem:[#allocation0]]
  $region18: #{tradeoff_loss.1} parent=0
    _
  %s5 = ssub.s32 1, %s3
  %s6 = scalar_select 0, %s5, %s3
  // Predicated region
  $region2: #{tradeoff_loss.1} parent=0 // pred_check
    _
  $region3: #{tradeoff_loss.1} parent=0 // pred_check_branch
    %8 = sbr.rel (0) target = $region5
  $region4: #{tradeoff_loss.1} parent=0 // pred_region
    _
  $region5: #{tradeoff_loss.1} parent=0 // pred_fallthru
    _
  // Predicated region
  $region6: #{tradeoff_loss.1} parent=0 // pred_check
    _
  $region7: #{tradeoff_loss.1} parent=0 // pred_check_branch
    %10 = sbr.rel (0) target = $region9
  $region8: #{tradeoff_loss.1} parent=0 // pred_region
    _
  $region9: #{tradeoff_loss.1} parent=0 // pred_fallthru
    _
  %v11 = vld [vmem:[%s0] sm:$0xff]
  %v12 = vld [vmem:[%s1] sm:$0xff]
  %v13 = vsub.f32 %v11, %v12
  %v14 = vand.u32 2147483647, %v13
  %v15 = vmul.f32 %v14, %v14
  %v16 = vadd.f32 %v15, 0.0
  %s17 = scalar_lea.vmem %s0, 8
  %v18 = vld [vmem:[%s17] sm:$0xff]
  %s19 = scalar_lea.vmem %s1, 8
  %v20 = vld [vmem:[%s19] sm:$0xff]
  %v21 = vsub.f32 %v18, %v20
  %v22 = vand.u32 2147483647, %v21
  %v23 = vmul.f32 %v22, %v22
  %v24 = vadd.f32 %v16, %v23
  %25 = vst [vmem:[%s2] sm:$0xff] %v24
  // Predicated region
  $region10: #{tradeoff_loss.1} parent=0 // pred_check
    _
  $region11: #{tradeoff_loss.1} parent=0 // pred_check_branch
    %27 = sbr.rel (0) target = $region13
  $region12: #{tradeoff_loss.1} parent=0 // pred_region
    _
  $region13: #{tradeoff_loss.1} parent=0 // pred_fallthru
    _
  // Predicated region
  $region14: #{tradeoff_loss.1} parent=0 // pred_check
    _
  $region15: #{tradeoff_loss.1} parent=0 // pred_check_branch
    %29 = sbr.rel (0) target = $region17
  $region16: #{tradeoff_loss.1} parent=0 // pred_region
    _
  $region17: #{tradeoff_loss.1} parent=0 // pred_fallthru
    _

</llo_original>
